<compile_context>
chip_gen: v7x
topology: tpu7x:2x2x1
jax: 0.10.0
libtpu: 0.0.40
codegen_flags: <defaults>
</compile_context>

<pallas_src>
import functools

import jax
import jax.numpy as jnp
from jax import lax
from jax.experimental import pallas as pl
from jax.experimental.pallas import tpu as pltpu


def _round_up(x, m):
    return ((x + m - 1) // m) * m


def _causal_conv_kernel(x_ref, w_ref, b_ref, o_ref, xext_ref, *,
                        kernel_size, dilation, pad, halo_cols, t_blk):
    # x_ref   : (1, C_in, T_blk)            current time block of x (auto-pipelined)
    # w_ref   : (co_blk, K*C_in)            tap-major flattened weights (resident)
    # b_ref   : (co_blk, 1)                 f32 bias (resident)
    # o_ref   : (1, co_blk, T_blk)          output block
    # xext_ref: (C_in, halo_cols + T_blk)   persistent scratch:
    #             cols [halo_cols - pad, halo_cols) = causal halo carried from the
    #             previous time block; cols [halo_cols, ...) = current block staged
    #             at a 128-aligned offset (the one big store needs no lane shift).
    c_in = x_ref.shape[1]
    t = pl.program_id(2)           # time is the innermost, sequential grid axis

    # First time block of each (c_out-tile, batch) pass: halo = causal zero padding.
    @pl.when(t == 0)
    def _():
        xext_ref[:, pl.ds(halo_cols - pad, pad)] = jnp.zeros(
            (c_in, pad), dtype=xext_ref.dtype)

    # Stage the current block once, lane-aligned.
    xext_ref[:, pl.ds(halo_cols, t_blk)] = x_ref[0]

    # Fused im2col contraction: gather the K dilation-shifted windows (tap K-1 is
    # the aligned window; the others pay a lane rotate on read, once per tap) and
    # issue a single deep MXU matmul with f32 accumulation.
    windows = [xext_ref[:, pl.ds(halo_cols - pad + j * dilation, t_blk)]
               for j in range(kernel_size)]
    rhs = jnp.concatenate(windows, axis=0) if kernel_size > 1 else windows[0]
    acc = jnp.dot(w_ref[...], rhs, preferred_element_type=jnp.float32)

    # Bias added once, fused into the cast/store (no full-width broadcast init).
    o_ref[0] = (acc + b_ref[...]).astype(o_ref.dtype)

    # Carry this block's tail as the next block's halo (sourced from the staged
    # copy, not a second read of x_ref).
    xext_ref[:, pl.ds(halo_cols - pad, pad)] = (
        xext_ref[:, pl.ds(halo_cols + t_blk - pad, pad)])


def causal_conv1d(x, weight, bias, *, dilation=1, time_block=512,
                  out_channel_block=None, vmem_budget_bytes=12 * 1024 * 1024):
    """x: (B, C_in, T); weight: (C_out, C_in, K); bias: (C_out,) -> (B, C_out, T).

    `time_block` is the requested time-tile width (rounded to a multiple of 128 and
    clamped by a VMEM budget).  `out_channel_block` optionally adds a parallel
    C_out-tile grid axis (v7x megacore for B==1, accumulator-pressure bound for
    large C_out).  Pass bf16 `x` for a bf16-operand / f32-accumulate path.
    """
    B, c_in, T = x.shape
    c_out, c_in_w, kernel_size = weight.shape
    assert c_in_w == c_in, (weight.shape, x.shape)
    if kernel_size < 2:
        raise ValueError(
            "kernel_size must be >= 2: the PyTorch module's `x[:, :, :-padding]` "
            "slice is ill-defined when padding == 0.")
    pad = (kernel_size - 1) * dilation

    # C_out tile: multiple of 8 (or the full extent).  Kept on the OUTERMOST grid
    # axis so the carried halo scratch (reset at t==0) stays valid.
    if out_channel_block is None or out_channel_block >= c_out:
        co_blk = c_out
    else:
        co_blk = min(c_out, _round_up(out_channel_block, 8))
    num_co = pl.cdiv(c_out, co_blk)

    # Time tile: >=512 by default (amortizes the ~0.35us/step overhead, lane-dense
    # stores), multiple of 128, at least the causal halo, and capped by a simple
    # per-column VMEM model (2x double-buffered x block + staged block + fused
    # im2col RHS + double-buffered out block + f32 accumulator) so double-buffering
    # survives v7x's 32 MiB scoped-VMEM default.
    itemsize = jnp.dtype(x.dtype).itemsize
    t_blk = _round_up(max(1, min(time_block, T)), 128)
    per_col = itemsize * ((3 + kernel_size) * c_in + 2 * co_blk) + 4 * co_blk
    max_cols = max(128, (vmem_budget_bytes // max(per_col, 1)) // 128 * 128)
    t_blk = min(t_blk, max_cols)
    t_blk = max(t_blk, _round_up(pad, 128), 128)
    halo_cols = _round_up(pad, 128)      # 128-aligned slot holding the carried halo
    num_t = pl.cdiv(T, t_blk)

    # Tap-major flattened weights (c_out, K*C_in): column (j*C_in + c) multiplies
    # channel c of the window shifted by j*dilation -> single deep contraction.
    w_full = jnp.transpose(weight, (0, 2, 1)).reshape(c_out, kernel_size * c_in)
    w_full = w_full.astype(x.dtype)          # bf16 x => bf16 MXU operands
    bias2d = bias.reshape(c_out, 1).astype(jnp.float32)

    kernel = functools.partial(
        _causal_conv_kernel,
        kernel_size=kernel_size, dilation=dilation, pad=pad,
        halo_cols=halo_cols, t_blk=t_blk)

    return pl.pallas_call(
        kernel,
        out_shape=jax.ShapeDtypeStruct((B, c_out, T), x.dtype),
        grid_spec=pltpu.PrefetchScalarGridSpec(
            num_scalar_prefetch=0,
            grid=(num_co, B, num_t),
            in_specs=[
                # NOTE(v5e): if a trace shows exposed DMA at 0.8 TB/s, deepen this
                # spec with pipeline_mode=pl.Buffered(3).
                pl.BlockSpec((1, c_in, t_blk), lambda co, b, t: (b, 0, t)),
                pl.BlockSpec((co_blk, kernel_size * c_in), lambda co, b, t: (co, 0)),
                pl.BlockSpec((co_blk, 1), lambda co, b, t: (co, 0)),
            ],
            out_specs=pl.BlockSpec((1, co_blk, t_blk), lambda co, b, t: (b, co, t)),
            scratch_shapes=[pltpu.VMEM((c_in, halo_cols + t_blk), x.dtype)],
        ),
        compiler_params=pltpu.CompilerParams(
            # Halo is carried across time steps -> time axis must stay sequential
            # ("arbitrary") and innermost; c_out-tile and batch axes are parallel.
            dimension_semantics=("parallel", "parallel", "arbitrary"),
        ),
    )(x, w_full, bias2d)


def _reference_causal_conv1d(x, weight, bias, *, dilation):
    """Pure-JAX f32 reference mirroring nn.Conv1d(padding=pad) + [:, :, :-pad]."""
    kernel_size = weight.shape[2]
    pad = (kernel_size - 1) * dilation
    y = lax.conv_general_dilated(
        x.astype(jnp.float32), weight.astype(jnp.float32),
        window_strides=(1,),
        padding=[(pad, pad)],
        rhs_dilation=(dilation,),
        dimension_numbers=("NCH", "OIH", "NCH"),
    )
    y = y + bias.astype(jnp.float32).reshape(1, -1, 1)
    return y[:, :, :-pad]


if __name__ == "__main__":
    def run_case(case_idx, *, B, c_in, c_out, kernel_size, dilation, T,
                 dtype=jnp.float32, time_block=512, out_channel_block=None,
                 atol=1e-4, rtol=1e-4):
        key = jax.random.fold_in(jax.random.PRNGKey(0), case_idx)
        kx, kw, kb = jax.random.split(key, 3)
        x = jax.random.normal(kx, (B, c_in, T), dtype=jnp.float32)
        # Deterministic synthetic parameters (same shapes as nn.Conv1d weight/bias).
        fan_in = c_in * kernel_size
        bound = 1.0 / (fan_in ** 0.5)
        weight = jax.random.uniform(kw, (c_out, c_in, kernel_size),
                                    minval=-bound, maxval=bound, dtype=jnp.float32)
        bias = jax.random.uniform(kb, (c_out,),
                                  minval=-bound, maxval=bound, dtype=jnp.float32)

        x = x.astype(dtype)
        weight = weight.astype(dtype)

        out = causal_conv1d(x, weight, bias, dilation=dilation,
                            time_block=time_block,
                            out_channel_block=out_channel_block)
        out = jax.block_until_ready(out)
        assert out.shape == (B, c_out, T), out.shape

        ref = _reference_causal_conv1d(x, weight, bias, dilation=dilation)
        out_f32 = out.astype(jnp.float32)
        err = float(jnp.max(jnp.abs(out_f32 - ref)))
        assert jnp.allclose(out_f32, ref, atol=atol, rtol=rtol), (case_idx, err)

    # Case 0: WaveNet-style dilated conv (K=2), default 512-wide time tiles, two
    # time blocks per batch element -> exercises the cross-block halo carry.
    run_case(0, B=2, c_in=32, c_out=32, kernel_size=2, dilation=2, T=1024)
    # Case 1: larger K / dilation and a ragged T (not a multiple of 128 or of the
    # tile), exercising the partial final time block.
    run_case(1, B=2, c_in=8, c_out=16, kernel_size=3, dilation=4, T=1000)
    # Case 2: bf16 operands (halved HBM traffic, f32 accumulation) with B=1 and a
    # parallel C_out-tile axis (v7x megacore); loose tolerance for bf16 rounding.
    run_case(2, B=1, c_in=16, c_out=32, kernel_size=2, dilation=1, T=768,
             dtype=jnp.bfloat16, out_channel_block=16, atol=5e-2, rtol=5e-2)

    print("KERNEL_OK")
</pallas_src>

<mosaic_0001>
module attributes {stable_mosaic.version = 11 : i64} {
  func.func @_causal_conv_kernel(%arg0: i32, %arg1: i32, %arg2: i32, %arg3: memref<1x32x512xf32, #tpu.memory_space<vmem>>, %arg4: memref<32x64xf32, #tpu.memory_space<vmem>>, %arg5: memref<32x1xf32, #tpu.memory_space<vmem>>, %arg6: memref<1x32x512xf32, #tpu.memory_space<vmem>>, %arg7: memref<32x640xf32, #tpu.memory_space<vmem>>) attributes {dimension_semantics = [#tpu.dimension_semantics<parallel>, #tpu.dimension_semantics<parallel>, #tpu.dimension_semantics<arbitrary>], iteration_bounds = array<i64: 1, 2, 2>, scalar_prefetch = 0 : i64, scratch_operands = 1 : i64, tpu.core_type = #tpu.core_type<tc>, window_params = [{transform_indices = @transform_0, window_bounds = array<i64: 1, 32, 512>}, {transform_indices = @transform_1, window_bounds = array<i64: 32, 64>}, {transform_indices = @transform_2, window_bounds = array<i64: 32, 1>}, {transform_indices = @transform_3, window_bounds = array<i64: 1, 32, 512>}]} {
    %c0_i32 = arith.constant 0 : i32
    %0 = arith.cmpi eq, %arg2, %c0_i32 : i32
    %1 = arith.extui %0 : i1 to i32
    %c0_i32_0 = arith.constant 0 : i32
    %2 = arith.cmpi ne, %1, %c0_i32_0 : i32
    scf.if %2 {
      %cst_17 = arith.constant 0.000000e+00 : f32
      %19 = vector.broadcast %cst_17 : f32 to vector<32x2xf32>
      %c0_18 = arith.constant 0 : index
      %c126_19 = arith.constant 126 : index
      %20 = vector.load %arg7[%c0_18, %c126_19] : memref<32x640xf32, #tpu.memory_space<vmem>>, vector<32x2xf32>
      tpu.vector_store %arg7[%c0_18, %c126_19], %19 {strides = array<i32>} : memref<32x640xf32, #tpu.memory_space<vmem>>, vector<32x2xf32>,
    } else {
    }
    %c0 = arith.constant 0 : index
    %c0_1 = arith.constant 0 : index
    %c0_2 = arith.constant 0 : index
    %3 = vector.load %arg3[%c0, %c0_1, %c0_2] : memref<1x32x512xf32, #tpu.memory_space<vmem>>, vector<1x32x512xf32>
    %4 = vector.shape_cast %3 : vector<1x32x512xf32> to vector<32x512xf32>
    %c0_3 = arith.constant 0 : index
    %c128 = arith.constant 128 : index
    %5 = vector.load %arg7[%c0_3, %c128] : memref<32x640xf32, #tpu.memory_space<vmem>>, vector<32x512xf32>
    tpu.vector_store %arg7[%c0_3, %c128], %4 {strides = array<i32>} : memref<32x640xf32, #tpu.memory_space<vmem>>, vector<32x512xf32>,
    %c0_4 = arith.constant 0 : index
    %c126 = arith.constant 126 : index
    %6 = vector.load %arg7[%c0_4, %c126] : memref<32x640xf32, #tpu.memory_space<vmem>>, vector<32x512xf32>
    %c0_5 = arith.constant 0 : index
    %c128_6 = arith.constant 128 : index
    %7 = vector.load %arg7[%c0_5, %c128_6] : memref<32x640xf32, #tpu.memory_space<vmem>>, vector<32x512xf32>
    %8 = tpu.concatenate %6, %7 in 0 : vector<32x512xf32>, vector<32x512xf32> -> vector<64x512xf32>
    %c0_7 = arith.constant 0 : index
    %c0_8 = arith.constant 0 : index
    %9 = vector.load %arg4[%c0_7, %c0_8] : memref<32x64xf32, #tpu.memory_space<vmem>>, vector<32x64xf32>
    %cst = arith.constant dense<0.000000e+00> : vector<32x512xf32>
    %10 = tpu.matmul %9, %8, %cst {dimension_numbers = #tpu.dot_dimension_numbers<[1], [0], [0], [1], [0, 0, 1, 1], [], []>} : vector<32x64xf32>, vector<64x512xf32>, vector<32x512xf32> -> vector<32x512xf32>
    %c0_9 = arith.constant 0 : index
    %c0_10 = arith.constant 0 : index
    %11 = vector.load %arg5[%c0_9, %c0_10] : memref<32x1xf32, #tpu.memory_space<vmem>>, vector<32x1xf32>
    %12 = vector.broadcast %11 : vector<32x1xf32> to vector<32x512xf32>
    %13 = arith.addf %10, %12 : vector<32x512xf32>
    %c0_11 = arith.constant 0 : index
    %c0_12 = arith.constant 0 : index
    %c0_13 = arith.constant 0 : index
    %14 = vector.load %arg6[%c0_11, %c0_12, %c0_13] : memref<1x32x512xf32, #tpu.memory_space<vmem>>, vector<1x32x512xf32>
    %15 = vector.shape_cast %14 : vector<1x32x512xf32> to vector<32x512xf32>
    %16 = vector.shape_cast %13 : vector<32x512xf32> to vector<1x32x512xf32>
    tpu.vector_store %arg6[%c0_11, %c0_12, %c0_13], %16 {strides = array<i32>} : memref<1x32x512xf32, #tpu.memory_space<vmem>>, vector<1x32x512xf32>,
    %c0_14 = arith.constant 0 : index
    %c638 = arith.constant 638 : index
    %17 = vector.load %arg7[%c0_14, %c638] : memref<32x640xf32, #tpu.memory_space<vmem>>, vector<32x2xf32>
    %c0_15 = arith.constant 0 : index
    %c126_16 = arith.constant 126 : index
    %18 = vector.load %arg7[%c0_15, %c126_16] : memref<32x640xf32, #tpu.memory_space<vmem>>, vector<32x2xf32>
    tpu.vector_store %arg7[%c0_15, %c126_16], %17 {strides = array<i32>} : memref<32x640xf32, #tpu.memory_space<vmem>>, vector<32x2xf32>,
    return
  }
  func.func @transform_0(%arg0: i32, %arg1: i32, %arg2: i32) -> (i32, i32, i32) {
    %c0_i32 = arith.constant 0 : i32
    %c0_i32_0 = arith.constant 0 : i32
    return %arg1, %c0_i32, %arg2 : i32, i32, i32
  }
  func.func @transform_1(%arg0: i32, %arg1: i32, %arg2: i32) -> (i32, i32) {
    %c0_i32 = arith.constant 0 : i32
    %c0_i32_0 = arith.constant 0 : i32
    return %arg0, %c0_i32 : i32, i32
  }
  func.func @transform_2(%arg0: i32, %arg1: i32, %arg2: i32) -> (i32, i32) {
    %c0_i32 = arith.constant 0 : i32
    %c0_i32_0 = arith.constant 0 : i32
    return %arg0, %c0_i32 : i32, i32
  }
  func.func @transform_3(%arg0: i32, %arg1: i32, %arg2: i32) -> (i32, i32, i32) {
    %c0_i32 = arith.constant 0 : i32
    return %arg1, %arg0, %arg2 : i32, i32, i32
  }
}

</mosaic_0001>

<llo_original>
// kernel: tpu_custom_call.1
$region0: #{tpu_custom_call.1}
  #allocation0 [shape = 'u32[]', space=smem, size = 0x4, offset = 0x4, fixed_abs, tag = 'smem constant byte address 0x4 - core index']
  #allocation1 [shape = 'u32[144,128]{1,0:T(1,128)}', space=vmem, size = 0x12000, scoped, tag = 'internal scratch']
  #allocation2 [shape = 'f32[32,640]{1,0:T(8,128)}', space=vmem, size = 0x14000, scoped, tag = 'scratch operand']
  %s0 = inlined_call_operand.hbm [shape: f32[2,32,1024], index: 0, kind: input, shape index: {}]
  %s1 = inlined_call_operand.vmem [shape: f32[32,64], index: 1, kind: input, shape index: {}]
  %s2 = inlined_call_operand.vmem [shape: f32[32,1], index: 2, kind: input, shape index: {}]
  %s3 = inlined_call_operand.hbm [shape: f32[2,32,1024], index: 3, kind: output, shape index: {}]
  %s4 = sld [smem:[#allocation0]]
  $region53: #{tpu_custom_call.1} parent=0
    _
  %s6 = ssub.s32 1, %s4
  %s7 = scalar_select 0, %s6, %s4
  $region1: #{tpu_custom_call.1} parent=0
    #allocation3 [shape = 'u8[131072]{0}', space=vmem, size = 0x20000, scoped, tag = 'input window, operand 0']
    #allocation4 [shape = 's32[2]{0}', space=sflag, size = 0x8, scoped, tag = 'scoped memory for tpu_custom_call.1']
    #allocation5 [shape = 's32[2]{0}', space=sflag, size = 0x8, scoped, tag = 'scoped memory for tpu_custom_call.1']
    #allocation6 [shape = 'u8[131072]{0}', space=vmem, size = 0x20000, scoped, tag = 'output window, operand 0']
    %8 = vsyncpa [#allocation4], 0
    %s9 = scalar_lea.sflag [#allocation4], 1
    %10 = vsyncpa %s9, 0
    %11 = vsyncpa [#allocation5], 0
    %s12 = scalar_lea.sflag [#allocation5], 1
    %13 = vsyncpa %s12, 0
    loop: start=0, step=1, limit=6
    $region2: #{tpu_custom_call.1} parent=1 // loop_pre_header
      _
    $region3: #{tpu_custom_call.1} parent=1 // loop_header
      %s15 = sphi 0, %s19
      %p16 = scmp.ge.s32.totalorder %s15, 6
      %s22 = sphi 0, %s41
      %s23 = sphi 0, %s37
      %s24 = sphi 0, %s33
      %s25 = sphi 0, %s22
      %s26 = sphi 0, %s23
      %s27 = sphi 0, %s24
      %s28 = sphi 0, %s25
      %s29 = sphi 0, %s26
      %s30 = sphi 0, %s27
      %s46 = sphi 0, %s48
      %s49 = sphi 0, %s46
      %s50 = sphi 0, %s49
      %s66 = sphi 0, %s50
      %s72 = sphi 0, %s74
      %s75 = sphi 0, %s72
      %s76 = sphi 0, %s75
      %s92 = sphi 0, %s76
      %s98 = sphi 0, %s100
      %s101 = sphi 0, %s98
      %s102 = sphi 0, %s101
      %s118 = sphi 0, %s102
      %s128 = sphi 0, %s130
      %s131 = sphi 0, %s128
      %s132 = sphi 0, %s131
      %s148 = sphi 0, %s132
    $region4: #{tpu_custom_call.1} parent=1 // loop_header_branch
      %18 = sbr.rel (%p16) target = $region8
    $region5: #{tpu_custom_call.1} parent=1 // loop_body
      %s20 = ssub.s32 %s15, 1
      %s21 = ssub.s32 %s15, 2
      %s31 = sadd.s32 1, %s24
      %p32 = scmp.ge.s32.totalorder %s31, 2
      %s33 = scalar_select %p32, 0, %s31
      %s34 = sadd.s32 1, %s23
      %s35 = scalar_select %p32, %s34, %s23
      %p36 = scmp.ge.s32.totalorder %s35, 2
      %s37 = scalar_select %p36, 0, %s35
      %s38 = sadd.s32 1, %s22
      %s39 = scalar_select %p36, %s38, %s22
      %p40 = scmp.ge.s32.totalorder %s39, 1
      %s41 = scalar_select %p40, 0, %s39
      %s42 = ssub.s32 %s23, %s37
      %s43 = ssub.s32 %s24, %s33
      %s44 = sor.u32 %s42, %s43
      %p45 = scmp.eq.s32.totalorder %s44, 0
      %s47 = sadd.s32 %s46, 1
      %s48 = scalar_select %p45, %s46, %s47
      %p51 = pneg %p45
      %p52 = scmp.eq.s32.totalorder %s15, 3
      %p53 = por %p51, %p52
      %p54 = scmp.ne.s32.totalorder %s46, %s49
      %p55 = scmp.eq.s32.totalorder %s15, 0
      %p56 = por %p54, %p55
      %p57 = scmp.ne.s32.totalorder %s46, %s49
      %p58 = scmp.eq.s32.totalorder %s20, 3
      %p59 = por %p57, %p58
      %p60 = scmp.ne.s32.totalorder %s49, %s50
      %p61 = scmp.eq.s32.totalorder %s20, 0
      %p62 = por %p60, %p61
      %p63 = scmp.ne.s32.totalorder %s49, %s50
      %p64 = scmp.eq.s32.totalorder %s21, 3
      %p65 = por %p63, %p64
      %p67 = scmp.ne.s32.totalorder %s50, %s66
      %p68 = scmp.eq.s32.totalorder %s21, 0
      %p69 = por %p67, %p68
      %s70 = ssub.s32 %s22, %s41
      %p71 = scmp.eq.s32.totalorder %s70, 0
      %s73 = sadd.s32 %s72, 1
      %s74 = scalar_select %p71, %s72, %s73
      %p77 = pneg %p71
      %p78 = scmp.eq.s32.totalorder %s15, 3
      %p79 = por %p77, %p78
      %p80 = scmp.ne.s32.totalorder %s72, %s75
      %p81 = scmp.eq.s32.totalorder %s15, 0
      %p82 = por %p80, %p81
      %p83 = scmp.ne.s32.totalorder %s72, %s75
      %p84 = scmp.eq.s32.totalorder %s20, 3
      %p85 = por %p83, %p84
      %p86 = scmp.ne.s32.totalorder %s75, %s76
      %p87 = scmp.eq.s32.totalorder %s20, 0
      %p88 = por %p86, %p87
      %p89 = scmp.ne.s32.totalorder %s75, %s76
      %p90 = scmp.eq.s32.totalorder %s21, 3
      %p91 = por %p89, %p90
      %p93 = scmp.ne.s32.totalorder %s76, %s92
      %p94 = scmp.eq.s32.totalorder %s21, 0
      %p95 = por %p93, %p94
      %s96 = ssub.s32 %s22, %s41
      %p97 = scmp.eq.s32.totalorder %s96, 0
      %s99 = sadd.s32 %s98, 1
      %s100 = scalar_select %p97, %s98, %s99
      %p103 = pneg %p97
      %p104 = scmp.eq.s32.totalorder %s15, 3
      %p105 = por %p103, %p104
      %p106 = scmp.ne.s32.totalorder %s98, %s101
      %p107 = scmp.eq.s32.totalorder %s15, 0
      %p108 = por %p106, %p107
      %p109 = scmp.ne.s32.totalorder %s98, %s101
      %p110 = scmp.eq.s32.totalorder %s20, 3
      %p111 = por %p109, %p110
      %p112 = scmp.ne.s32.totalorder %s101, %s102
      %p113 = scmp.eq.s32.totalorder %s20, 0
      %p114 = por %p112, %p113
      %p115 = scmp.ne.s32.totalorder %s101, %s102
      %p116 = scmp.eq.s32.totalorder %s21, 3
      %p117 = por %p115, %p116
      %p119 = scmp.ne.s32.totalorder %s102, %s118
      %p120 = scmp.eq.s32.totalorder %s21, 0
      %p121 = por %p119, %p120
      %s122 = ssub.s32 %s23, %s37
      %s123 = ssub.s32 %s22, %s41
      %s124 = sor.u32 %s122, %s123
      %s125 = ssub.s32 %s24, %s33
      %s126 = sor.u32 %s124, %s125
      %p127 = scmp.eq.s32.totalorder %s126, 0
      %s129 = sadd.s32 %s128, 1
      %s130 = scalar_select %p127, %s128, %s129
      %p133 = pneg %p127
      %p134 = scmp.eq.s32.totalorder %s15, 3
      %p135 = por %p133, %p134
      %p136 = scmp.ne.s32.totalorder %s128, %s131
      %p137 = scmp.eq.s32.totalorder %s15, 0
      %p138 = por %p136, %p137
      %p139 = scmp.ne.s32.totalorder %s128, %s131
      %p140 = scmp.eq.s32.totalorder %s20, 3
      %p141 = por %p139, %p140
      %p142 = scmp.ne.s32.totalorder %s131, %s132
      %p143 = scmp.eq.s32.totalorder %s20, 0
      %p144 = por %p142, %p143
      %p145 = scmp.ne.s32.totalorder %s131, %s132
      %p146 = scmp.eq.s32.totalorder %s21, 3
      %p147 = por %p145, %p146
      %p149 = scmp.ne.s32.totalorder %s132, %s148
      %p150 = scmp.eq.s32.totalorder %s21, 0
      %p151 = por %p149, %p150
      %p152 = scmp.le.s32.totalorder 1, %s15
      %p153 = scmp.lt.s32.totalorder %s15, 5
      %p154 = pnand %p152, %p153
      %p155 = pneg %p154
      // Predicated region
      $region9: #{tpu_custom_call.1} parent=5 // pred_check
        _
      $region10: #{tpu_custom_call.1} parent=5 // pred_check_branch
        %157 = sbr.rel (%p154) target = $region12
      $region11: #{tpu_custom_call.1} parent=5 // pred_region
        %s158 = ssub.s32 %s15, 1
        // Predicated region
        $region13: #{tpu_custom_call.1} parent=11 // pred_check
          %p159 = pneg %p88
        $region14: #{tpu_custom_call.1} parent=11 // pred_check_branch
          %161 = sbr.rel (%p159) target = $region16
        $region15: #{tpu_custom_call.1} parent=11 // pred_region
          %s162 = smul.u32 4, %s25
          %p163 = scmp.lt.s32.totalorder %s162, 3
          %s164 = scalar_select %p163, %s162, 3
          %s165 = smul.addr %s164, 8
          %s166 = scalar_lea.vmem %s1, %s165
          %s167 = smul.u32 4, %s25
        $region16: #{tpu_custom_call.1} parent=11 // pred_fallthru
          _
        // Predicated region
        $region17: #{tpu_custom_call.1} parent=11 // pred_check
          %p168 = pneg %p114
        $region18: #{tpu_custom_call.1} parent=11 // pred_check_branch
          %170 = sbr.rel (%p168) target = $region20
        $region19: #{tpu_custom_call.1} parent=11 // pred_region
          %s171 = smul.u32 4, %s25
          %p172 = scmp.lt.s32.totalorder %s171, 3
          %s173 = scalar_select %p172, %s171, 3
          %s174 = smul.addr %s173, 8
          %s175 = scalar_lea.vmem %s2, %s174
          %s176 = smul.u32 4, %s25
        $region20: #{tpu_custom_call.1} parent=11 // pred_fallthru
          _
      $region12: #{tpu_custom_call.1} parent=5 // pred_fallthru
        _
      %p177 = scmp.lt.s32.totalorder %s15, 4
      // Predicated region
      $region21: #{tpu_custom_call.1} parent=5 // pred_check
        %p178 = pneg %p177
      $region22: #{tpu_custom_call.1} parent=5 // pred_check_branch
        %180 = sbr.rel (%p178) target = $region24
      $region23: #{tpu_custom_call.1} parent=5 // pred_region
        // Predicated region
        $region25: #{tpu_custom_call.1} parent=23 // pred_check
          %p181 = pneg %p56
        $region26: #{tpu_custom_call.1} parent=23 // pred_check_branch
          %183 = sbr.rel (%p181) target = $region28
        $region27: #{tpu_custom_call.1} parent=23 // pred_region
          %s184 = sand.u32 %s46, 1
          %s185 = scalar_lea.sflag [#allocation4], %s184
          %s186 = sand.u32 %s46, 1
          %s187 = smul.addr %s186, 128
          %s188 = scalar_lea.vmem [#allocation3], %s187
          %s189 = smul.u32 4, %s24
          %s191 = ssub.s32 2048, 2048
          %192 = vsyncadd %s185, %s191
          %s193 = smul.addr %s23, 32
          %s194 = sadd.s32 %s189, %s193
          %s195 = smul.addr %s194, 128
          %s196 = scalar_lea.hbm %s0, %s195
          %s197 = sshll.u32 %s188, 4
          %s198 = int_to_ptr.vmem [resolvable:$true] %s197
          %203 = dma.hbm_to_vmem [thread:$0]  %s196, 2048, %s198, %s185, 1024, 512, 32
        $region28: #{tpu_custom_call.1} parent=23 // pred_fallthru
          _
      $region24: #{tpu_custom_call.1} parent=5 // pred_fallthru
        _
      %p204 = scmp.le.s32.totalorder 1, %s15
      %p205 = scmp.lt.s32.totalorder %s15, 5
      %p206 = pnand %p204, %p205
      %p207 = pneg %p206
      // Predicated region
      $region29: #{tpu_custom_call.1} parent=5 // pred_check
        _
      $region30: #{tpu_custom_call.1} parent=5 // pred_check_branch
        %209 = sbr.rel (%p206) target = $region32
      $region31: #{tpu_custom_call.1} parent=5 // pred_region
        %s210 = ssub.s32 %s15, 1
        %s211 = sand.u32 %s49, 1
        %s212 = scalar_lea.sflag [#allocation4], %s211
        %s213 = sand.u32 %s49, 1
        %s214 = smul.addr %s213, 128
        %s215 = scalar_lea.vmem [#allocation3], %s214
        // Predicated region
        $region33: #{tpu_custom_call.1} parent=31 // pred_check
          %p216 = pneg %p62
        $region34: #{tpu_custom_call.1} parent=31 // pred_check_branch
          %218 = sbr.rel (%p216) target = $region36
        $region35: #{tpu_custom_call.1} parent=31 // pred_region
          %219 = dma.done %s212, 2048
        $region36: #{tpu_custom_call.1} parent=31 // pred_fallthru
          _
        %s220 = sand.u32 %s49, 1
        %s221 = scalar_lea.sflag [#allocation4], %s220
        %s222 = sand.u32 %s49, 1
        %s223 = smul.addr %s222, 128
        %s224 = scalar_lea.vmem [#allocation3], %s223
        %p225 = pneg %p62
        %p226 = pneg %p59
        %s227 = smul.u32 4, %s25
        %p228 = scmp.lt.s32.totalorder %s227, 3
        %s229 = scalar_select %p228, %s227, 3
        %s230 = smul.addr %s229, 8
        %s231 = scalar_lea.vmem %s1, %s230
        %p232 = pneg %p88
        %p233 = pneg %p85
        %s234 = smul.u32 4, %s25
        %p235 = scmp.lt.s32.totalorder %s234, 3
        %s236 = scalar_select %p235, %s234, 3
        %s237 = smul.addr %s236, 8
        %s238 = scalar_lea.vmem %s2, %s237
        %p239 = pneg %p114
        %p240 = pneg %p111
        %p241 = pneg %p144
        %p242 = pneg %p141
        %s243 = sand.u32 %s131, 1
        %s244 = scalar_lea.sflag [#allocation5], %s243
        %s245 = sand.u32 %s131, 1
        %s246 = smul.addr %s245, 128
        %s247 = scalar_lea.vmem [#allocation6], %s246
        %s248 = smul.u32 4, %s27
        %s249 = smul.u32 4, %s25
        %p250 = scmp.lt.s32.totalorder %s249, 3
        %s251 = scalar_select %p250, %s249, 3
        %s252 = smul.addr %s251, 8
        %s253 = scalar_lea.vmem %s1, %s252
        %s254 = smul.u32 4, %s25
        %s255 = smul.u32 4, %s25
        %p256 = scmp.lt.s32.totalorder %s255, 3
        %s257 = scalar_select %p256, %s255, 3
        %s258 = smul.addr %s257, 8
        %s259 = scalar_lea.vmem %s2, %s258
        %s260 = smul.u32 4, %s25
        %s261 = smul.u32 4, %s25
        %s262 = smul.u32 4, %s27
        %p263 = scmp.eq.s32.totalorder %s27, 0
        // Predicated region
        $region37: #{tpu_custom_call.1} parent=31 // pred_check
          %p264 = pneg %p263
        $region38: #{tpu_custom_call.1} parent=31 // pred_check_branch
          %266 = sbr.rel (%p264) target = $region40
        $region39: #{tpu_custom_call.1} parent=31 // pred_region
          %vm267 = vcmask 1048560
          %268 = vst.msk [vmem:[#allocation2] sm:$0xff] %vm267, 0.0
          %269 = vst.msk [vmem:[#allocation2 + $0x28] sm:$0xff] %vm267, 0.0
          %270 = vst.msk [vmem:[#allocation2 + $0x50] sm:$0xff] %vm267, 0.0
          %271 = vst.msk [vmem:[#allocation2 + $0x78] sm:$0xff] %vm267, 0.0
        $region40: #{tpu_custom_call.1} parent=31 // pred_fallthru
          _
        %v272 = vld [vmem:[%s215] sm:$0xff]
        %v273 = vld [vmem:[%s215 + $0x8] sm:$0xff]
        %v274 = vld [vmem:[%s215 + $0x10] sm:$0xff]
        %v275 = vld [vmem:[%s215 + $0x18] sm:$0xff]
        %v276 = vld [vmem:[%s215 + $0x20] sm:$0xff]
        %v277 = vld [vmem:[%s215 + $0x28] sm:$0xff]
        %v278 = vld [vmem:[%s215 + $0x30] sm:$0xff]
        %v279 = vld [vmem:[%s215 + $0x38] sm:$0xff]
        %v280 = vld [vmem:[%s215 + $0x40] sm:$0xff]
        %v281 = vld [vmem:[%s215 + $0x48] sm:$0xff]
        %v282 = vld [vmem:[%s215 + $0x50] sm:$0xff]
        %v283 = vld [vmem:[%s215 + $0x58] sm:$0xff]
        %v284 = vld [vmem:[%s215 + $0x60] sm:$0xff]
        %v285 = vld [vmem:[%s215 + $0x68] sm:$0xff]
        %v286 = vld [vmem:[%s215 + $0x70] sm:$0xff]
        %v287 = vld [vmem:[%s215 + $0x78] sm:$0xff]
        %288 = vst [vmem:[#allocation2 + $0x8] sm:$0xff] %v272
        %289 = vst [vmem:[#allocation2 + $0x10] sm:$0xff] %v273
        %290 = vst [vmem:[#allocation2 + $0x18] sm:$0xff] %v274
        %291 = vst [vmem:[#allocation2 + $0x20] sm:$0xff] %v275
        %292 = vst [vmem:[#allocation2 + $0x30] sm:$0xff] %v276
        %293 = vst [vmem:[#allocation2 + $0x38] sm:$0xff] %v277
        %294 = vst [vmem:[#allocation2 + $0x40] sm:$0xff] %v278
        %295 = vst [vmem:[#allocation2 + $0x48] sm:$0xff] %v279
        %296 = vst [vmem:[#allocation2 + $0x58] sm:$0xff] %v280
        %297 = vst [vmem:[#allocation2 + $0x60] sm:$0xff] %v281
        %298 = vst [vmem:[#allocation2 + $0x68] sm:$0xff] %v282
        %299 = vst [vmem:[#allocation2 + $0x70] sm:$0xff] %v283
        %300 = vst [vmem:[#allocation2 + $0x80] sm:$0xff] %v284
        %301 = vst [vmem:[#allocation2 + $0x88] sm:$0xff] %v285
        %302 = vst [vmem:[#allocation2 + $0x90] sm:$0xff] %v286
        %303 = vst [vmem:[#allocation2 + $0x98] sm:$0xff] %v287
        %v304 = vld [vmem:[#allocation2] sm:$0xff]
        %v305 = vld [vmem:[#allocation2 + $0x8] sm:$0xff]
        %v306 = vld [vmem:[#allocation2 + $0x10] sm:$0xff]
        %v307 = vld [vmem:[#allocation2 + $0x18] sm:$0xff]
        %v308 = vld [vmem:[#allocation2 + $0x20] sm:$0xff]
        %v309 = vld [vmem:[#allocation2 + $0x28] sm:$0xff]
        %v310 = vld [vmem:[#allocation2 + $0x30] sm:$0xff]
        %v311 = vld [vmem:[#allocation2 + $0x38] sm:$0xff]
        %v312 = vld [vmem:[#allocation2 + $0x40] sm:$0xff]
        %v313 = vld [vmem:[#allocation2 + $0x48] sm:$0xff]
        %v314 = vld [vmem:[#allocation2 + $0x50] sm:$0xff]
        %v315 = vld [vmem:[#allocation2 + $0x58] sm:$0xff]
        %v316 = vld [vmem:[#allocation2 + $0x60] sm:$0xff]
        %v317 = vld [vmem:[#allocation2 + $0x68] sm:$0xff]
        %v318 = vld [vmem:[#allocation2 + $0x70] sm:$0xff]
        %v319 = vld [vmem:[#allocation2 + $0x78] sm:$0xff]
        %v320 = vld [vmem:[#allocation2 + $0x80] sm:$0xff]
        %v321 = vld [vmem:[#allocation2 + $0x88] sm:$0xff]
        %v322 = vld [vmem:[#allocation2 + $0x90] sm:$0xff]
        %v323 = vld [vmem:[#allocation2 + $0x98] sm:$0xff]
        %340 = vrot.lane.b32.xlu0 %v305, 126
        %v341 = vpop.permute.xlu0 %340
        %342 = vrot.lane.b32.xlu0 %v306, 126
        %v343 = vpop.permute.xlu0 %342
        %344 = vrot.lane.b32.xlu0 %v307, 126
        %v345 = vpop.permute.xlu0 %344
        %346 = vrot.lane.b32.xlu0 %v308, 126
        %v347 = vpop.permute.xlu0 %346
        %348 = vrot.lane.b32.xlu0 %v310, 126
        %v349 = vpop.permute.xlu0 %348
        %350 = vrot.lane.b32.xlu0 %v311, 126
        %v351 = vpop.permute.xlu0 %350
        %352 = vrot.lane.b32.xlu0 %v312, 126
        %v353 = vpop.permute.xlu0 %352
        %354 = vrot.lane.b32.xlu0 %v313, 126
        %v355 = vpop.permute.xlu0 %354
        %356 = vrot.lane.b32.xlu0 %v315, 126
        %v357 = vpop.permute.xlu0 %356
        %358 = vrot.lane.b32.xlu0 %v316, 126
        %v359 = vpop.permute.xlu0 %358
        %360 = vrot.lane.b32.xlu0 %v317, 126
        %v361 = vpop.permute.xlu0 %360
        %362 = vrot.lane.b32.xlu0 %v318, 126
        %v363 = vpop.permute.xlu0 %362
        %364 = vrot.lane.b32.xlu0 %v320, 126
        %v365 = vpop.permute.xlu0 %364
        %366 = vrot.lane.b32.xlu0 %v321, 126
        %v367 = vpop.permute.xlu0 %366
        %368 = vrot.lane.b32.xlu0 %v322, 126
        %v369 = vpop.permute.xlu0 %368
        %370 = vrot.lane.b32.xlu0 %v323, 126
        %v371 = vpop.permute.xlu0 %370
        %vm372 = vcmask 1031168
        %v373 = vsel %vm372, %v341, %v343
        %v374 = vsel %vm372, %v343, %v345
        %v375 = vsel %vm372, %v345, %v347
        %v376 = vsel %vm372, %v349, %v351
        %v377 = vsel %vm372, %v351, %v353
        %v378 = vsel %vm372, %v353, %v355
        %v379 = vsel %vm372, %v357, %v359
        %v380 = vsel %vm372, %v359, %v361
        %v381 = vsel %vm372, %v361, %v363
        %v382 = vsel %vm372, %v365, %v367
        %v383 = vsel %vm372, %v367, %v369
        %v384 = vsel %vm372, %v369, %v371
        %v385 = vld [vmem:[%s253] sm:$0xff]
        %v386 = vld [vmem:[%s253 + $0x8] sm:$0xff]
        %v387 = vld [vmem:[%s253 + $0x10] sm:$0xff]
        %v388 = vld [vmem:[%s253 + $0x18] sm:$0xff]
        %v389 = vld [vmem:[%s259] sm:$0xff]
        %v390 = vld [vmem:[%s259 + $0x8] sm:$0xff]
        %v391 = vld [vmem:[%s259 + $0x10] sm:$0xff]
        %v392 = vld [vmem:[%s259 + $0x18] sm:$0xff]
        %394 = vset.pattern.permute.xlu0 0
        %395 = vperm.xlu0 %394, %v389
        %v396 = vpop.permute.xlu0 %395
        %399 = vset.pattern.permute.xlu0 0
        %400 = vperm.xlu0 %399, %v390
        %v401 = vpop.permute.xlu0 %400
        %404 = vset.pattern.permute.xlu0 0
        %405 = vperm.xlu0 %404, %v391
        %v406 = vpop.permute.xlu0 %405
        %409 = vset.pattern.permute.xlu0 0
        %410 = vperm.xlu0 %409, %v392
        %v411 = vpop.permute.xlu0 %410
        %417 = vrot.lane.b32.xlu0 %v304, 2
        %v418 = vpop.permute.xlu0 %417
        %419 = vrot.lane.b32.xlu0 %v305, 2
        %v420 = vpop.permute.xlu0 %419
        %421 = vrot.lane.b32.xlu0 %v306, 2
        %v422 = vpop.permute.xlu0 %421
        %423 = vrot.lane.b32.xlu0 %v307, 2
        %v424 = vpop.permute.xlu0 %423
        %425 = vrot.lane.b32.xlu0 %v308, 2
        %v426 = vpop.permute.xlu0 %425
        %427 = vrot.lane.b32.xlu0 %v309, 2
        %v428 = vpop.permute.xlu0 %427
        %429 = vrot.lane.b32.xlu0 %v310, 2
        %v430 = vpop.permute.xlu0 %429
        %431 = vrot.lane.b32.xlu0 %v311, 2
        %v432 = vpop.permute.xlu0 %431
        %433 = vrot.lane.b32.xlu0 %v312, 2
        %v434 = vpop.permute.xlu0 %433
        %435 = vrot.lane.b32.xlu0 %v313, 2
        %v436 = vpop.permute.xlu0 %435
        %437 = vrot.lane.b32.xlu0 %v314, 2
        %v438 = vpop.permute.xlu0 %437
        %439 = vrot.lane.b32.xlu0 %v315, 2
        %v440 = vpop.permute.xlu0 %439
        %441 = vrot.lane.b32.xlu0 %v316, 2
        %v442 = vpop.permute.xlu0 %441
        %443 = vrot.lane.b32.xlu0 %v317, 2
        %v444 = vpop.permute.xlu0 %443
        %445 = vrot.lane.b32.xlu0 %v318, 2
        %v446 = vpop.permute.xlu0 %445
        %447 = vrot.lane.b32.xlu0 %v319, 2
        %v448 = vpop.permute.xlu0 %447
        %449 = vrot.lane.b32.xlu0 %v320, 2
        %v450 = vpop.permute.xlu0 %449
        %451 = vrot.lane.b32.xlu0 %v321, 2
        %v452 = vpop.permute.xlu0 %451
        %453 = vrot.lane.b32.xlu0 %v322, 2
        %v454 = vpop.permute.xlu0 %453
        %455 = vrot.lane.b32.xlu0 %v323, 2
        %v456 = vpop.permute.xlu0 %455
        %457 = vrot.lane.b32.xlu0 %v341, 2
        %v458 = vpop.permute.xlu0 %457
        %459 = vrot.lane.b32.xlu0 %v373, 2
        %v460 = vpop.permute.xlu0 %459
        %461 = vrot.lane.b32.xlu0 %v374, 2
        %v462 = vpop.permute.xlu0 %461
        %463 = vrot.lane.b32.xlu0 %v375, 2
        %v464 = vpop.permute.xlu0 %463
        %465 = vrot.lane.b32.xlu0 %v347, 2
        %v466 = vpop.permute.xlu0 %465
        %467 = vrot.lane.b32.xlu0 %v349, 2
        %v468 = vpop.permute.xlu0 %467
        %469 = vrot.lane.b32.xlu0 %v376, 2
        %v470 = vpop.permute.xlu0 %469
        %471 = vrot.lane.b32.xlu0 %v377, 2
        %v472 = vpop.permute.xlu0 %471
        %473 = vrot.lane.b32.xlu0 %v378, 2
        %v474 = vpop.permute.xlu0 %473
        %475 = vrot.lane.b32.xlu0 %v355, 2
        %v476 = vpop.permute.xlu0 %475
        %477 = vrot.lane.b32.xlu0 %v357, 2
        %v478 = vpop.permute.xlu0 %477
        %479 = vrot.lane.b32.xlu0 %v379, 2
        %v480 = vpop.permute.xlu0 %479
        %481 = vrot.lane.b32.xlu0 %v380, 2
        %v482 = vpop.permute.xlu0 %481
        %483 = vrot.lane.b32.xlu0 %v381, 2
        %v484 = vpop.permute.xlu0 %483
        %485 = vrot.lane.b32.xlu0 %v363, 2
        %v486 = vpop.permute.xlu0 %485
        %487 = vrot.lane.b32.xlu0 %v365, 2
        %v488 = vpop.permute.xlu0 %487
        %489 = vrot.lane.b32.xlu0 %v382, 2
        %v490 = vpop.permute.xlu0 %489
        %491 = vrot.lane.b32.xlu0 %v383, 2
        %v492 = vpop.permute.xlu0 %491
        %493 = vrot.lane.b32.xlu0 %v384, 2
        %v494 = vpop.permute.xlu0 %493
        %495 = vrot.lane.b32.xlu0 %v371, 2
        %v496 = vpop.permute.xlu0 %495
        %vm497 = vcmask 15360
        %v498 = vsel %vm497, %v418, %v420
        %v499 = vsel %vm497, %v420, %v422
        %v500 = vsel %vm497, %v422, %v424
        %v501 = vsel %vm497, %v424, %v426
        %v502 = vsel %vm497, %v428, %v430
        %v503 = vsel %vm497, %v430, %v432
        %v504 = vsel %vm497, %v432, %v434
        %v505 = vsel %vm497, %v434, %v436
        %v506 = vsel %vm497, %v438, %v440
        %v507 = vsel %vm497, %v440, %v442
        %v508 = vsel %vm497, %v442, %v444
        %v509 = vsel %vm497, %v444, %v446
        %v510 = vsel %vm497, %v448, %v450
        %v511 = vsel %vm497, %v450, %v452
        %v512 = vsel %vm497, %v452, %v454
        %v513 = vsel %vm497, %v454, %v456
        %v514 = vsel %vm497, %v458, %v460
        %v515 = vsel %vm497, %v460, %v462
        %v516 = vsel %vm497, %v462, %v464
        %v517 = vsel %vm497, %v464, %v466
        %v518 = vsel %vm497, %v468, %v470
        %v519 = vsel %vm497, %v470, %v472
        %v520 = vsel %vm497, %v472, %v474
        %v521 = vsel %vm497, %v474, %v476
        %v522 = vsel %vm497, %v478, %v480
        %v523 = vsel %vm497, %v480, %v482
        %v524 = vsel %vm497, %v482, %v484
        %v525 = vsel %vm497, %v484, %v486
        %v526 = vsel %vm497, %v488, %v490
        %v527 = vsel %vm497, %v490, %v492
        %v528 = vsel %vm497, %v492, %v494
        %v529 = vsel %vm497, %v494, %v496
        %vm562 = vcmask 523264
        %v564 = vsel %vm562, %v385, 0
        %v567 = vsel %vm562, %v386, 0
        %v570 = vsel %vm562, %v387, 0
        %v573 = vsel %vm562, %v388, 0
        %575 = vmatprep.subr.mxu0 %v499
        %576 = vmatpush1.msra.mxu0 %v498
        %577 = vmatprep.subr.mxu0 %v503
        %578 = vmatpush1.msra.mxu0 %v502
        %579 = vmatprep.subr.mxu0 %v507
        %580 = vmatpush1.msra.mxu0 %v506
        %581 = vmatprep.subr.mxu0 %v511
        %582 = vmatpush1.msra.mxu0 %v510
        %583 = vmatprep.subr.mxu0 %v515
        %584 = vmatpush1.msra.mxu0 %v514
        %585 = vmatprep.subr.mxu0 %v519
        %586 = vmatpush1.msra.mxu0 %v518
        %587 = vmatprep.subr.mxu0 %v523
        %588 = vmatpush1.msra.mxu0 %v522
        %589 = vmatprep.subr.mxu0 %v527
        %590 = vmatpush1.msra.mxu0 %v526
        %591 = vmatprep.subr.mxu0 0.0
        %592 = vmatpush1.msra.mxu0 0.0
        %593 = vmatprep.subr.mxu0 0.0
        %594 = vmatpush1.msra.mxu0 0.0
        %595 = vmatprep.subr.mxu0 0.0
        %596 = vmatpush1.msra.mxu0 0.0
        %597 = vmatprep.subr.mxu0 0.0
        %598 = vmatpush1.msra.mxu0 0.0
        %599 = vmatprep.subr.mxu0 0.0
        %600 = vmatpush1.msra.mxu0 0.0
        %601 = vmatprep.subr.mxu0 0.0
        %602 = vmatpush1.msra.mxu0 0.0
        %603 = vmatprep.subr.mxu0 0.0
        %604 = vmatpush1.msra.mxu0 0.0
        %605 = vmatprep.subr.mxu0 0.0
        %606 = vmatpush1.msra.mxu0 0.0
        %607 = vmatprep.subr.mxu0 0.0
        %608 = vmatpush1.msra.mxu0 0.0
        %609 = vmatprep.subr.mxu0 0.0
        %610 = vmatpush1.msra.mxu0 0.0
        %611 = vmatprep.subr.mxu0 0.0
        %612 = vmatpush1.msra.mxu0 0.0
        %613 = vmatprep.subr.mxu0 0.0
        %614 = vmatpush1.msra.mxu0 0.0
        %615 = vmatprep.subr.mxu0 0.0
        %616 = vmatpush1.msra.mxu0 0.0
        %617 = vmatprep.subr.mxu0 0.0
        %618 = vmatpush1.msra.mxu0 0.0
        %619 = vmatprep.subr.mxu0 0.0
        %620 = vmatpush1.msra.mxu0 0.0
        %621 = vmatprep.subr.mxu0 0.0
        %622 = vmatpush1.msra.mxu0 0.0
        %623 = vmatprep.subr.mxu0 0.0
        %624 = vmatpush1.msra.mxu0 0.0
        %625 = vmatprep.subr.mxu0 0.0
        %626 = vmatpush1.msra.mxu0 0.0
        %627 = vmatprep.subr.mxu0 0.0
        %628 = vmatpush1.msra.mxu0 0.0
        %629 = vmatprep.subr.mxu0 0.0
        %630 = vmatpush1.msra.mxu0 0.0
        %631 = vmatprep.subr.mxu0 0.0
        %632 = vmatpush1.msra.mxu0 0.0
        %633 = vmatprep.subr.mxu0 0.0
        %634 = vmatpush1.msra.mxu0 0.0
        %635 = vmatprep.subr.mxu0 0.0
        %636 = vmatpush1.msra.mxu0 0.0
        %637 = vmatprep.subr.mxu0 0.0
        %638 = vmatpush1.msra.mxu0 0.0
        %639 = vmatprep.mubr.f32.mxu0 0.0
        %640 = vmatmul.mubr.f32.gmra.mrb[0].mxu0 %v564
        %v641 = vpop.f32.mrb[0].mxu0
        %v642 = vadd.f32 %v396, %v641
        %v643 = vpop.f32.mrb[0].mxu0
        %v644 = vadd.f32 %v396, %v643
        %645 = vmatprep.mubr.f32.mxu0 0.0
        %646 = vmatmul.mubr.f32.gmra.mrb[0].mxu0 %v567
        %v647 = vpop.f32.mrb[0].mxu0
        %v648 = vadd.f32 %v401, %v647
        %v649 = vpop.f32.mrb[0].mxu0
        %v650 = vadd.f32 %v401, %v649
        %651 = vmatprep.mubr.f32.mxu0 0.0
        %652 = vmatmul.mubr.f32.gmra.mrb[0].mxu0 %v570
        %v653 = vpop.f32.mrb[0].mxu0
        %v654 = vadd.f32 %v406, %v653
        %v655 = vpop.f32.mrb[0].mxu0
        %v656 = vadd.f32 %v406, %v655
        %657 = vmatprep.mubr.f32.mxu0 0.0
        %658 = vmatmul.mubr.f32.gmra.mrb[0].mxu0 %v573
        %v659 = vpop.f32.mrb[0].mxu0
        %v660 = vadd.f32 %v411, %v659
        %v661 = vpop.f32.mrb[0].mxu0
        %v662 = vadd.f32 %v411, %v661
        %663 = vdwg.mxu0
        %664 = vmatprep.subr.mxu0 %v501
        %665 = vmatpush1.msra.mxu0 %v500
        %666 = vmatprep.subr.mxu0 %v505
        %667 = vmatpush1.msra.mxu0 %v504
        %668 = vmatprep.subr.mxu0 %v509
        %669 = vmatpush1.msra.mxu0 %v508
        %670 = vmatprep.subr.mxu0 %v513
        %671 = vmatpush1.msra.mxu0 %v512
        %672 = vmatprep.subr.mxu0 %v517
        %673 = vmatpush1.msra.mxu0 %v516
        %674 = vmatprep.subr.mxu0 %v521
        %675 = vmatpush1.msra.mxu0 %v520
        %676 = vmatprep.subr.mxu0 %v525
        %677 = vmatpush1.msra.mxu0 %v524
        %678 = vmatprep.subr.mxu0 %v529
        %679 = vmatpush1.msra.mxu0 %v528
        %680 = vmatprep.subr.mxu0 0.0
        %681 = vmatpush1.msra.mxu0 0.0
        %682 = vmatprep.subr.mxu0 0.0
        %683 = vmatpush1.msra.mxu0 0.0
        %684 = vmatprep.subr.mxu0 0.0
        %685 = vmatpush1.msra.mxu0 0.0
        %686 = vmatprep.subr.mxu0 0.0
        %687 = vmatpush1.msra.mxu0 0.0
        %688 = vmatprep.subr.mxu0 0.0
        %689 = vmatpush1.msra.mxu0 0.0
        %690 = vmatprep.subr.mxu0 0.0
        %691 = vmatpush1.msra.mxu0 0.0
        %692 = vmatprep.subr.mxu0 0.0
        %693 = vmatpush1.msra.mxu0 0.0
        %694 = vmatprep.subr.mxu0 0.0
        %695 = vmatpush1.msra.mxu0 0.0
        %696 = vmatprep.subr.mxu0 0.0
        %697 = vmatpush1.msra.mxu0 0.0
        %698 = vmatprep.subr.mxu0 0.0
        %699 = vmatpush1.msra.mxu0 0.0
        %700 = vmatprep.subr.mxu0 0.0
        %701 = vmatpush1.msra.mxu0 0.0
        %702 = vmatprep.subr.mxu0 0.0
        %703 = vmatpush1.msra.mxu0 0.0
        %704 = vmatprep.subr.mxu0 0.0
        %705 = vmatpush1.msra.mxu0 0.0
        %706 = vmatprep.subr.mxu0 0.0
        %707 = vmatpush1.msra.mxu0 0.0
        %708 = vmatprep.subr.mxu0 0.0
        %709 = vmatpush1.msra.mxu0 0.0
        %710 = vmatprep.subr.mxu0 0.0
        %711 = vmatpush1.msra.mxu0 0.0
        %712 = vmatprep.subr.mxu0 0.0
        %713 = vmatpush1.msra.mxu0 0.0
        %714 = vmatprep.subr.mxu0 0.0
        %715 = vmatpush1.msra.mxu0 0.0
        %716 = vmatprep.subr.mxu0 0.0
        %717 = vmatpush1.msra.mxu0 0.0
        %718 = vmatprep.subr.mxu0 0.0
        %719 = vmatpush1.msra.mxu0 0.0
        %720 = vmatprep.subr.mxu0 0.0
        %721 = vmatpush1.msra.mxu0 0.0
        %722 = vmatprep.subr.mxu0 0.0
        %723 = vmatpush1.msra.mxu0 0.0
        %724 = vmatprep.subr.mxu0 0.0
        %725 = vmatpush1.msra.mxu0 0.0
        %726 = vmatprep.subr.mxu0 0.0
        %727 = vmatpush1.msra.mxu0 0.0
        %728 = vmatprep.mubr.f32.mxu0 0.0
        %729 = vmatmul.mubr.f32.gmra.mrb[0].mxu0 %v564
        %v730 = vpop.f32.mrb[0].mxu0
        %v731 = vadd.f32 %v396, %v730
        %v732 = vpop.f32.mrb[0].mxu0
        %v733 = vadd.f32 %v396, %v732
        %734 = vmatprep.mubr.f32.mxu0 0.0
        %735 = vmatmul.mubr.f32.gmra.mrb[0].mxu0 %v567
        %v736 = vpop.f32.mrb[0].mxu0
        %v737 = vadd.f32 %v401, %v736
        %v738 = vpop.f32.mrb[0].mxu0
        %v739 = vadd.f32 %v401, %v738
        %740 = vmatprep.mubr.f32.mxu0 0.0
        %741 = vmatmul.mubr.f32.gmra.mrb[0].mxu0 %v570
        %v742 = vpop.f32.mrb[0].mxu0
        %v743 = vadd.f32 %v406, %v742
        %v744 = vpop.f32.mrb[0].mxu0
        %v745 = vadd.f32 %v406, %v744
        %746 = vmatprep.mubr.f32.mxu0 0.0
        %747 = vmatmul.mubr.f32.gmra.mrb[0].mxu0 %v573
        %v748 = vpop.f32.mrb[0].mxu0
        %v749 = vadd.f32 %v411, %v748
        %v750 = vpop.f32.mrb[0].mxu0
        %v751 = vadd.f32 %v411, %v750
        %752 = vdwg.mxu0
        %753 = vst [vmem:[%s247] sm:$0xff] %v642
        %754 = vst [vmem:[%s247 + $0x8] sm:$0xff] %v644
        %755 = vst [vmem:[%s247 + $0x10] sm:$0xff] %v731
        %756 = vst [vmem:[%s247 + $0x18] sm:$0xff] %v733
        %757 = vst [vmem:[%s247 + $0x20] sm:$0xff] %v648
        %758 = vst [vmem:[%s247 + $0x28] sm:$0xff] %v650
        %759 = vst [vmem:[%s247 + $0x30] sm:$0xff] %v737
        %760 = vst [vmem:[%s247 + $0x38] sm:$0xff] %v739
        %761 = vst [vmem:[%s247 + $0x40] sm:$0xff] %v654
        %762 = vst [vmem:[%s247 + $0x48] sm:$0xff] %v656
        %763 = vst [vmem:[%s247 + $0x50] sm:$0xff] %v743
        %764 = vst [vmem:[%s247 + $0x58] sm:$0xff] %v745
        %765 = vst [vmem:[%s247 + $0x60] sm:$0xff] %v660
        %766 = vst [vmem:[%s247 + $0x68] sm:$0xff] %v662
        %767 = vst [vmem:[%s247 + $0x70] sm:$0xff] %v749
        %768 = vst [vmem:[%s247 + $0x78] sm:$0xff] %v751
        %v769 = vld [vmem:[#allocation2 + $0x20] sm:$0xff]
        %v770 = vld [vmem:[#allocation2 + $0x48] sm:$0xff]
        %v771 = vld [vmem:[#allocation2 + $0x70] sm:$0xff]
        %v772 = vld [vmem:[#allocation2 + $0x98] sm:$0xff]
        %vm773 = vcmask 1048560
        %774 = vst.msk [vmem:[#allocation2] sm:$0xff] %vm773, %v769
        %775 = vst.msk [vmem:[#allocation2 + $0x28] sm:$0xff] %vm773, %v770
        %776 = vst.msk [vmem:[#allocation2 + $0x50] sm:$0xff] %vm773, %v771
        %777 = vst.msk [vmem:[#allocation2 + $0x78] sm:$0xff] %vm773, %v772
        %s778 = sand.u32 %s131, 1
        %s779 = scalar_lea.sflag [#allocation5], %s778
        %s780 = sand.u32 %s131, 1
        %s781 = smul.addr %s780, 128
        %s782 = scalar_lea.vmem [#allocation6], %s781
        // Predicated region
        $region41: #{tpu_custom_call.1} parent=31 // pred_check
          %p783 = pneg %p141
        $region42: #{tpu_custom_call.1} parent=31 // pred_check_branch
          %785 = sbr.rel (%p783) target = $region44
        $region43: #{tpu_custom_call.1} parent=31 // pred_region
          %s786 = smul.u32 4, %s25
          %s787 = smul.u32 4, %s27
          %s789 = ssub.s32 2048, 2048
          %790 = vsyncadd %s779, %s789
          %s791 = smul.addr %s786, 8
          %s792 = sadd.s32 %s787, %s791
          %s793 = smul.addr %s26, 32
          %s794 = sadd.s32 %s792, %s793
          %s795 = smul.addr %s794, 128
          %s796 = scalar_lea.hbm %s3, %s795
          %s797 = sshll.u32 %s782, 4
          %s798 = int_to_ptr.vmem [resolvable:$true] %s797
          %803 = dma.vmem_to_hbm [thread:$0]  %s798, 2048, %s796, %s779, 512, 1024, 32
        $region44: #{tpu_custom_call.1} parent=31 // pred_fallthru
          _
      $region32: #{tpu_custom_call.1} parent=5 // pred_fallthru
        _
      %p804 = scmp.le.s32.totalorder 2, %s15
      // Predicated region
      $region45: #{tpu_custom_call.1} parent=5 // pred_check
        %p805 = pneg %p804
      $region46: #{tpu_custom_call.1} parent=5 // pred_check_branch
        %807 = sbr.rel (%p805) target = $region48
      $region47: #{tpu_custom_call.1} parent=5 // pred_region
        %s808 = ssub.s32 %s15, 2
        // Predicated region
        $region49: #{tpu_custom_call.1} parent=47 // pred_check
          %p809 = pneg %p147
        $region50: #{tpu_custom_call.1} parent=47 // pred_check_branch
          %811 = sbr.rel (%p809) target = $region52
        $region51: #{tpu_custom_call.1} parent=47 // pred_region
          %s812 = sand.u32 %s132, 1
          %s813 = scalar_lea.sflag [#allocation5], %s812
          %s814 = sand.u32 %s132, 1
          %s815 = smul.addr %s814, 128
          %s816 = scalar_lea.vmem [#allocation6], %s815
          %817 = dma.done %s813, 2048
        $region52: #{tpu_custom_call.1} parent=47 // pred_fallthru
          _
      $region48: #{tpu_custom_call.1} parent=5 // pred_fallthru
        _
    $region6: #{tpu_custom_call.1} parent=1 // loop_footer
      %s19 = sadd.s32 1, %s15
    $region7: #{tpu_custom_call.1} parent=1 // loop_footer_branch
      %14 = sbr.rel target = $region3
    $region8: #{tpu_custom_call.1} parent=1 // loop_exit
      _
    %818 = vsyncpa [#allocation4], 1
    %s819 = scalar_lea.sflag [#allocation4], 1
    %820 = vsyncpa %s819, 1
    %821 = vsyncpa [#allocation5], 1
    %s822 = scalar_lea.sflag [#allocation5], 1
    %823 = vsyncpa %s822, 1

</llo_original>
